<compile_context>
chip_gen: v7x
topology: tpu7x:2x2x1
jax: 0.10.0
libtpu: 0.0.40
codegen_flags: <defaults>
</compile_context>

<pallas_src>
import functools

import jax
import jax.numpy as jnp
from jax.experimental import pallas as pl
from jax.experimental.pallas import tpu as pltpu


# --------------------------------------------------------------------------- #
# Helpers
# --------------------------------------------------------------------------- #
def _round_up(n, m):
    return ((n + m - 1) // m) * m


def _vmem_limit_bytes(default=64 * 1024 * 1024):
    """~75% of physical VMEM per TensorCore (96 MiB v5e/v6e, 48 MiB v7x)."""
    try:
        info = pltpu.get_tpu_info()
        cap = getattr(info, "vmem_capacity_bytes", None)
        if cap:
            return max(32 * 1024 * 1024, int(cap) * 3 // 4)
    except Exception:
        pass
    return default


try:
    _SINGLE_BUF = pl.Buffered(1)          # single-buffer resident operands
except Exception:                          # pragma: no cover - old jax fallback
    _SINGLE_BUF = None


def _resident_spec(shape):
    """BlockSpec for a VMEM-resident operand (constant index_map)."""
    if _SINGLE_BUF is not None:
        try:
            return pl.BlockSpec(shape, lambda i: (0, 0), pipeline_mode=_SINGLE_BUF)
        except TypeError:
            pass
    return pl.BlockSpec(shape, lambda i: (0, 0))


def _pick_tm(batch, pdims, resident_bytes, vmem_limit, tm_max):
    """Largest batch tile (multiple of 8) that fits the VMEM budget."""
    budget = int(vmem_limit * 0.6)                # leave pipeline/spill headroom
    tm_cap = max(8, _round_up(batch, 8))
    best = 8
    for tm in (8, 16, 32, 64, 128, 256, 512):
        if tm > tm_max or tm > tm_cap:
            break
        # double-buffered x tile + double-buffered out tile, f32
        act_bytes = 2 * tm * (pdims[0] + pdims[-1]) * 4
        if resident_bytes + act_bytes <= budget:
            best = tm
    return best


# --------------------------------------------------------------------------- #
# Kernel
# --------------------------------------------------------------------------- #
def _fused_mlp_kernel(pdims, num_layers, *refs):
    """refs = (x_ref, w_0, ..., w_{L-1}, biases_ref, o_ref).

    Computes  h = silu(h @ W_i + b_i)  for every layer entirely in VMEM and
    writes only the final layer's activations.  `biases_ref` holds all biases
    packed as (num_layers, max_pad).
    """
    x_ref = refs[0]
    w_refs = refs[1:1 + num_layers]
    b_ref = refs[1 + num_layers]
    o_ref = refs[2 + num_layers]

    h = x_ref[...]                                   # (TM, pad_in) f32
    # TODO(synk): if tm >= 512 ever shows vld/vst spill saturation, stage `h`
    # through a declared VMEM scratch instead of keeping it in vregs.
    for li in range(num_layers):                     # static unrolled layer loop
        w = w_refs[li][...]                          # (pad_in_i, pad_out_i)
        b = b_ref[li:li + 1, :pdims[li + 1]]         # (1, pad_out_i)
        y = jnp.dot(h.astype(w.dtype), w,
                    preferred_element_type=jnp.float32) + b
        h = y * jax.nn.sigmoid(y)                    # SiLU, f32
    o_ref[...] = h.astype(o_ref.dtype)


# --------------------------------------------------------------------------- #
# Forward wrapper (runs fully under jit: pad x -> fused kernel -> slice)
# --------------------------------------------------------------------------- #
def _forward_impl(x, pweights, pbiases, *, out_dim, pdims, vmem_limit, tm_max):
    batch, in_dim = x.shape
    num_layers = len(pweights)
    pad_in, out_pad = pdims[0], pdims[-1]

    # Resident bytes (weights + packed biases), conservatively counted x2.
    resident_bytes = 2 * (sum(int(w.size) * w.dtype.itemsize for w in pweights)
                          + int(pbiases.size) * pbiases.dtype.itemsize)
    tm = _pick_tm(batch, pdims, resident_bytes, vmem_limit, tm_max)
    pbatch = _round_up(batch, tm)

    # Zero-pad the input to a lane-dense, tile-aligned slab (skipped if aligned).
    if pbatch != batch or pad_in != in_dim:
        xp = jnp.zeros((pbatch, pad_in), jnp.float32).at[:batch, :in_dim].set(x)
    else:
        xp = x

    in_specs = [pl.BlockSpec((tm, pad_in), lambda i: (i, 0))]
    for w in pweights:
        in_specs.append(_resident_spec(w.shape))     # resident, single-buffered
    in_specs.append(_resident_spec(pbiases.shape))   # packed biases, resident

    kernel = functools.partial(_fused_mlp_kernel, tuple(pdims), num_layers)

    out = pl.pallas_call(
        kernel,
        out_shape=jax.ShapeDtypeStruct((pbatch, out_pad), jnp.float32),
        grid_spec=pltpu.PrefetchScalarGridSpec(
            num_scalar_prefetch=0,
            grid=(pbatch // tm,),
            in_specs=in_specs,
            out_specs=pl.BlockSpec((tm, out_pad), lambda i: (i, 0)),
        ),
        compiler_params=pltpu.CompilerParams(
            dimension_semantics=("parallel",),
            vmem_limit_bytes=int(vmem_limit),
        ),
    )(xp, *pweights, pbiases)

    if pbatch != batch or out_pad != out_dim:
        out = out[:batch, :out_dim]
    return out


# --------------------------------------------------------------------------- #
# Module
# --------------------------------------------------------------------------- #
class FEMFNNPallas:
    """JAX/Pallas re-implementation of the FEMFNN forward pass."""

    LANE = 128

    def __init__(self, input_dim, output_dim, input_sup, input_inf, num_nodes,
                 key=jax.random.PRNGKey(0), param_dtype=jnp.float32,
                 tm_max=256):
        self.input_sup = input_sup
        self.input_inf = input_inf

        dims = [input_dim] + list(num_nodes)
        self.dims = dims
        self.weights = []       # unpadded, (in, out) layout, f32
        self.biases = []
        for i in range(len(dims) - 1):
            key, kw, kb = jax.random.split(key, 3)
            bound = 1.0 / jnp.sqrt(dims[i])
            # PyTorch-style uniform init; stored as (in, out) so y = x @ W + b.
            w = jax.random.uniform(kw, (dims[i], dims[i + 1]),
                                   minval=-bound, maxval=bound,
                                   dtype=jnp.float32)
            b = jax.random.uniform(kb, (dims[i + 1],),
                                   minval=-bound, maxval=bound,
                                   dtype=jnp.float32)
            self.weights.append(w)
            self.biases.append(b)

        # `coefficient` exists in the torch module but is unused in forward.
        key, kc = jax.random.split(key)
        self.coefficient = jax.random.normal(
            kc, (output_dim, num_nodes[-1]), dtype=jnp.float32)

        # ----- pad parameters ONCE (hoisted out of the per-call path) -------
        pdims = [_round_up(d, self.LANE) for d in dims]
        self.pdims = pdims
        self.pweights = []
        for li, w in enumerate(self.weights):
            wp = (jnp.zeros((pdims[li], pdims[li + 1]), jnp.float32)
                  .at[:w.shape[0], :w.shape[1]].set(w)).astype(param_dtype)
            self.pweights.append(wp)
        max_pad = max(pdims[1:])
        bp = jnp.zeros((len(self.biases), max_pad), jnp.float32)
        for li, b in enumerate(self.biases):
            bp = bp.at[li, :b.shape[0]].set(b)
        self.pbiases = bp                              # biases stay f32

        self._forward = jax.jit(functools.partial(
            _forward_impl,
            out_dim=dims[-1],
            pdims=tuple(pdims),
            vmem_limit=_vmem_limit_bytes(),
            tm_max=tm_max,
        ))

    def __call__(self, x):
        return self._forward(x, tuple(self.pweights), self.pbiases)


def _reference_forward(x, weights, biases):
    """Plain-JAX reference for correctness check."""
    for w, b in zip(weights, biases):
        x = x @ w + b
        x = x * jax.nn.sigmoid(x)
    return x


if __name__ == "__main__":
    # Small, forward-consistent shapes: batch=16, input_dim=4, hidden=[32, 32].
    batch = 16
    input_dim = 4
    output_dim = 1
    num_nodes = [32, 32]

    model = FEMFNNPallas(
        input_dim=input_dim,
        output_dim=output_dim,
        input_sup=1.0,
        input_inf=-1.0,
        num_nodes=num_nodes,
        key=jax.random.PRNGKey(0),
    )

    x = jax.random.normal(jax.random.PRNGKey(0), (batch, input_dim),
                          dtype=jnp.float32)
    out = jax.block_until_ready(model(x))
    ref = _reference_forward(x, model.weights, model.biases)
    assert out.shape == (batch, num_nodes[-1])
    assert jnp.allclose(out, ref, atol=1e-5, rtol=1e-5), "mismatch vs reference"

    # Larger batch: exercises the multi-tile "parallel" grid and batch padding.
    x2 = jax.random.normal(jax.random.PRNGKey(1), (384, input_dim),
                           dtype=jnp.float32)
    out2 = jax.block_until_ready(model(x2))
    ref2 = _reference_forward(x2, model.weights, model.biases)
    assert out2.shape == (384, num_nodes[-1])
    assert jnp.allclose(out2, ref2, atol=1e-5, rtol=1e-5), "mismatch (large batch)"

    print("KERNEL_OK")
</pallas_src>

<mosaic_0001>
module attributes {stable_mosaic.version = 11 : i64} {
  func.func @_fused_mlp_kernel(%arg0: i32, %arg1: memref<16x128xf32, #tpu.memory_space<vmem>>, %arg2: memref<128x128xf32, #tpu.memory_space<vmem>>, %arg3: memref<128x128xf32, #tpu.memory_space<vmem>>, %arg4: memref<2x128xf32, #tpu.memory_space<vmem>>, %arg5: memref<16x128xf32, #tpu.memory_space<vmem>>) attributes {dimension_semantics = [#tpu.dimension_semantics<parallel>], iteration_bounds = array<i64: 1>, scalar_prefetch = 0 : i64, scratch_operands = 0 : i64, tpu.core_type = #tpu.core_type<tc>, window_params = [{transform_indices = @transform_0, window_bounds = array<i64: 16, 128>}, {pipeline_mode = #tpu.pipeline_mode<synchronous>, transform_indices = @transform_1, window_bounds = array<i64: 128, 128>}, {pipeline_mode = #tpu.pipeline_mode<synchronous>, transform_indices = @transform_2, window_bounds = array<i64: 128, 128>}, {pipeline_mode = #tpu.pipeline_mode<synchronous>, transform_indices = @transform_3, window_bounds = array<i64: 2, 128>}, {transform_indices = @transform_4, window_bounds = array<i64: 16, 128>}]} {
    %c0 = arith.constant 0 : index
    %c0_0 = arith.constant 0 : index
    %0 = vector.load %arg1[%c0, %c0_0] : memref<16x128xf32, #tpu.memory_space<vmem>>, vector<16x128xf32>
    %c0_1 = arith.constant 0 : index
    %c0_2 = arith.constant 0 : index
    %1 = vector.load %arg2[%c0_1, %c0_2] : memref<128x128xf32, #tpu.memory_space<vmem>>, vector<128x128xf32>
    %c0_3 = arith.constant 0 : index
    %c0_4 = arith.constant 0 : index
    %2 = vector.load %arg4[%c0_3, %c0_4] : memref<2x128xf32, #tpu.memory_space<vmem>>, vector<1x128xf32>
    %cst = arith.constant dense<0.000000e+00> : vector<16x128xf32>
    %3 = tpu.matmul %0, %1, %cst {dimension_numbers = #tpu.dot_dimension_numbers<[1], [0], [0], [1], [0, 0, 1, 1], [], []>} : vector<16x128xf32>, vector<128x128xf32>, vector<16x128xf32> -> vector<16x128xf32>
    %4 = vector.broadcast %2 : vector<1x128xf32> to vector<16x128xf32>
    %5 = arith.addf %3, %4 : vector<16x128xf32>
    %6 = arith.negf %5 : vector<16x128xf32>
    %7 = math.exp %6 : vector<16x128xf32>
    %cst_5 = arith.constant 1.000000e+00 : f32
    %8 = vector.broadcast %cst_5 : f32 to vector<16x128xf32>
    %9 = arith.addf %8, %7 : vector<16x128xf32>
    %10 = arith.divf %8, %9 : vector<16x128xf32>
    %11 = arith.mulf %5, %10 : vector<16x128xf32>
    %c0_6 = arith.constant 0 : index
    %c0_7 = arith.constant 0 : index
    %12 = vector.load %arg3[%c0_6, %c0_7] : memref<128x128xf32, #tpu.memory_space<vmem>>, vector<128x128xf32>
    %c1 = arith.constant 1 : index
    %c0_8 = arith.constant 0 : index
    %13 = vector.load %arg4[%c1, %c0_8] : memref<2x128xf32, #tpu.memory_space<vmem>>, vector<1x128xf32>
    %cst_9 = arith.constant dense<0.000000e+00> : vector<16x128xf32>
    %14 = tpu.matmul %11, %12, %cst_9 {dimension_numbers = #tpu.dot_dimension_numbers<[1], [0], [0], [1], [0, 0, 1, 1], [], []>} : vector<16x128xf32>, vector<128x128xf32>, vector<16x128xf32> -> vector<16x128xf32>
    %15 = vector.broadcast %13 : vector<1x128xf32> to vector<16x128xf32>
    %16 = arith.addf %14, %15 : vector<16x128xf32>
    %17 = arith.negf %16 : vector<16x128xf32>
    %18 = math.exp %17 : vector<16x128xf32>
    %cst_10 = arith.constant 1.000000e+00 : f32
    %19 = vector.broadcast %cst_10 : f32 to vector<16x128xf32>
    %20 = arith.addf %19, %18 : vector<16x128xf32>
    %21 = arith.divf %19, %20 : vector<16x128xf32>
    %22 = arith.mulf %16, %21 : vector<16x128xf32>
    %c0_11 = arith.constant 0 : index
    %c0_12 = arith.constant 0 : index
    %23 = vector.load %arg5[%c0_11, %c0_12] : memref<16x128xf32, #tpu.memory_space<vmem>>, vector<16x128xf32>
    tpu.vector_store %arg5[%c0_11, %c0_12], %22 {strides = array<i32>} : memref<16x128xf32, #tpu.memory_space<vmem>>, vector<16x128xf32>,
    return
  }
  func.func @transform_0(%arg0: i32) -> (i32, i32) {
    %c0_i32 = arith.constant 0 : i32
    %c0_i32_0 = arith.constant 0 : i32
    return %arg0, %c0_i32 : i32, i32
  }
  func.func @transform_1(%arg0: i32) -> (i32, i32) {
    %c0_i32 = arith.constant 0 : i32
    %c0_i32_0 = arith.constant 0 : i32
    %c0_i32_1 = arith.constant 0 : i32
    return %c0_i32, %c0_i32_0 : i32, i32
  }
  func.func @transform_2(%arg0: i32) -> (i32, i32) {
    %c0_i32 = arith.constant 0 : i32
    %c0_i32_0 = arith.constant 0 : i32
    %c0_i32_1 = arith.constant 0 : i32
    return %c0_i32, %c0_i32_0 : i32, i32
  }
  func.func @transform_3(%arg0: i32) -> (i32, i32) {
    %c0_i32 = arith.constant 0 : i32
    %c0_i32_0 = arith.constant 0 : i32
    %c0_i32_1 = arith.constant 0 : i32
    return %c0_i32, %c0_i32_0 : i32, i32
  }
  func.func @transform_4(%arg0: i32) -> (i32, i32) {
    %c0_i32 = arith.constant 0 : i32
    %c0_i32_0 = arith.constant 0 : i32
    return %arg0, %c0_i32 : i32, i32
  }
}

</mosaic_0001>

<llo_original>
// kernel: _forward_impl.1
$region0: #{_forward_impl.1}
  #allocation0 [shape = 'u32[]', space=smem, size = 0x4, offset = 0x4, fixed_abs, tag = 'smem constant byte address 0x4 - core index']
  #allocation1 [shape = 'u32[144,128]{1,0:T(1,128)}', space=vmem, size = 0x12000, scoped, tag = 'internal scratch']
  %s0 = inlined_call_operand.hbm [shape: f32[16,128], index: 0, kind: input, shape index: {}]
  %s1 = inlined_call_operand.hbm [shape: f32[128,128], index: 1, kind: input, shape index: {}]
  %s2 = inlined_call_operand.hbm [shape: f32[128,128], index: 2, kind: input, shape index: {}]
  %s3 = inlined_call_operand.hbm [shape: f32[2,128], index: 3, kind: input, shape index: {}]
  %s4 = inlined_call_operand.hbm [shape: f32[16,128], index: 4, kind: output, shape index: {}]
  %s5 = sld [smem:[#allocation0]]
  $region42: #{_forward_impl.1} parent=0
    _
  %s7 = ssub.s32 1, %s5
  %s8 = scalar_select 0, %s7, %s5
  $region1: #{_forward_impl.1} parent=0
    #allocation2 [shape = 'u8[8192]{0}', space=vmem, size = 0x2000, scoped, tag = 'input window, operand 0, single buffered']
    #allocation3 [shape = 's32[1]{0}', space=sflag, size = 0x4, scoped, tag = 'scoped memory for _forward_impl.1']
    #allocation4 [shape = 's32[1]{0}', space=sflag, size = 0x4, scoped, tag = 'scoped memory for _forward_impl.1']
    #allocation5 [shape = 'u8[65536]{0}', space=vmem, size = 0x10000, scoped, tag = 'input window, operand 1, single buffered']
    #allocation6 [shape = 's32[1]{0}', space=sflag, size = 0x4, scoped, tag = 'scoped memory for _forward_impl.1']
    #allocation7 [shape = 'u8[65536]{0}', space=vmem, size = 0x10000, scoped, tag = 'input window, operand 2, single buffered']
    #allocation8 [shape = 'u8[1024]{0}', space=vmem, size = 0x400, scoped, tag = 'input window, operand 3, single buffered']
    #allocation9 [shape = 's32[1]{0}', space=sflag, size = 0x4, scoped, tag = 'scoped memory for _forward_impl.1']
    #allocation10 [shape = 'u8[8192]{0}', space=vmem, size = 0x2000, scoped, tag = 'output window, operand 0, single buffered']
    %9 = vsyncpa [#allocation3], 0
    %10 = vsyncpa [#allocation6], 0
    %11 = vsyncpa [#allocation9], 0
    %12 = vsyncpa [#allocation4], 0
    // Predicated region
    $region2: #{_forward_impl.1} parent=1 // pred_check
      _
    $region3: #{_forward_impl.1} parent=1 // pred_check_branch
      %14 = sbr.rel (0) target = $region5
    $region4: #{_forward_impl.1} parent=1 // pred_region
      %s16 = ssub.s32 256, 256
      %17 = vsyncadd [#allocation3], %s16
      %s18 = sshll.u32 [#allocation2], 4
      %s19 = int_to_ptr.vmem [resolvable:$true] %s18
      %24 = dma.hbm_to_vmem [thread:$0]  %s0, 256, %s19, [#allocation3], 128, 128, 8
    $region5: #{_forward_impl.1} parent=1 // pred_fallthru
      _
    // Predicated region
    $region6: #{_forward_impl.1} parent=1 // pred_check
      _
    $region7: #{_forward_impl.1} parent=1 // pred_check_branch
      %26 = sbr.rel (0) target = $region9
    $region8: #{_forward_impl.1} parent=1 // pred_region
      %s28 = ssub.s32 2048, 2048
      %29 = vsyncadd [#allocation6], %s28
      %s30 = sshll.u32 [#allocation5], 4
      %s31 = int_to_ptr.vmem [resolvable:$true] %s30
      %36 = dma.hbm_to_vmem [thread:$0]  %s1, 2048, %s31, [#allocation6], 128, 128, 8
    $region9: #{_forward_impl.1} parent=1 // pred_fallthru
      _
    // Predicated region
    $region10: #{_forward_impl.1} parent=1 // pred_check
      _
    $region11: #{_forward_impl.1} parent=1 // pred_check_branch
      %38 = sbr.rel (0) target = $region13
    $region12: #{_forward_impl.1} parent=1 // pred_region
      %s40 = ssub.s32 2048, 2048
      %41 = vsyncadd [#allocation6], %s40
      %s42 = sshll.u32 [#allocation7], 4
      %s43 = int_to_ptr.vmem [resolvable:$true] %s42
      %48 = dma.hbm_to_vmem [thread:$0]  %s2, 2048, %s43, [#allocation6], 128, 128, 8
    $region13: #{_forward_impl.1} parent=1 // pred_fallthru
      _
    // Predicated region
    $region14: #{_forward_impl.1} parent=1 // pred_check
      _
    $region15: #{_forward_impl.1} parent=1 // pred_check_branch
      %50 = sbr.rel (0) target = $region17
    $region16: #{_forward_impl.1} parent=1 // pred_region
      %s52 = ssub.s32 32, 32
      %53 = vsyncadd [#allocation9], %s52
      %s55 = sshll.u32 [#allocation8], 4
      %s56 = int_to_ptr.vmem [resolvable:$true] %s55
      %58 = dma.hbm_to_vmem [thread:$0]  %s3, 32, %s56, [#allocation9]
    $region17: #{_forward_impl.1} parent=1 // pred_fallthru
      _
    // Predicated region
    $region18: #{_forward_impl.1} parent=1 // pred_check
      _
    $region19: #{_forward_impl.1} parent=1 // pred_check_branch
      %60 = sbr.rel (0) target = $region21
    $region20: #{_forward_impl.1} parent=1 // pred_region
      %61 = dma.done [#allocation3], 256
    $region21: #{_forward_impl.1} parent=1 // pred_fallthru
      _
    // Predicated region
    $region22: #{_forward_impl.1} parent=1 // pred_check
      _
    $region23: #{_forward_impl.1} parent=1 // pred_check_branch
      %63 = sbr.rel (0) target = $region25
    $region24: #{_forward_impl.1} parent=1 // pred_region
      %64 = dma.done [#allocation6], 2048
    $region25: #{_forward_impl.1} parent=1 // pred_fallthru
      _
    // Predicated region
    $region26: #{_forward_impl.1} parent=1 // pred_check
      _
    $region27: #{_forward_impl.1} parent=1 // pred_check_branch
      %66 = sbr.rel (0) target = $region29
    $region28: #{_forward_impl.1} parent=1 // pred_region
      %67 = dma.done [#allocation6], 2048
    $region29: #{_forward_impl.1} parent=1 // pred_fallthru
      _
    // Predicated region
    $region30: #{_forward_impl.1} parent=1 // pred_check
      _
    $region31: #{_forward_impl.1} parent=1 // pred_check_branch
      %69 = sbr.rel (0) target = $region33
    $region32: #{_forward_impl.1} parent=1 // pred_region
      %70 = dma.done [#allocation9], 32
    $region33: #{_forward_impl.1} parent=1 // pred_fallthru
      _
    %v71 = vld [vmem:[#allocation2] sm:$0xff]
    %v72 = vld [vmem:[#allocation2 + $0x8] sm:$0xff]
    %v73 = vld [vmem:[#allocation5] sm:$0xff]
    %v74 = vld [vmem:[#allocation5 + $0x8] sm:$0xff]
    %v75 = vld [vmem:[#allocation5 + $0x10] sm:$0xff]
    %v76 = vld [vmem:[#allocation5 + $0x18] sm:$0xff]
    %v77 = vld [vmem:[#allocation5 + $0x20] sm:$0xff]
    %v78 = vld [vmem:[#allocation5 + $0x28] sm:$0xff]
    %v79 = vld [vmem:[#allocation5 + $0x30] sm:$0xff]
    %v80 = vld [vmem:[#allocation5 + $0x38] sm:$0xff]
    %v81 = vld [vmem:[#allocation5 + $0x40] sm:$0xff]
    %v82 = vld [vmem:[#allocation5 + $0x48] sm:$0xff]
    %v83 = vld [vmem:[#allocation5 + $0x50] sm:$0xff]
    %v84 = vld [vmem:[#allocation5 + $0x58] sm:$0xff]
    %v85 = vld [vmem:[#allocation5 + $0x60] sm:$0xff]
    %v86 = vld [vmem:[#allocation5 + $0x68] sm:$0xff]
    %v87 = vld [vmem:[#allocation5 + $0x70] sm:$0xff]
    %v88 = vld [vmem:[#allocation5 + $0x78] sm:$0xff]
    %v89 = vld [vmem:[#allocation8] sm:$0x1]
    %v90 = vlaneseq
    %v91 = vshrl.u32 %v90, 7
    %v92 = vsub.s32 0, %v91
    %v93 = vrot.slane %v89, %v92
    %94 = vmatprep.subr.mxu0 0.0
    %95 = vmatpush1.msra.mxu0 %v73
    %96 = vmatprep.subr.mxu0 0.0
    %97 = vmatpush1.msra.mxu0 %v74
    %98 = vmatprep.subr.mxu0 0.0
    %99 = vmatpush1.msra.mxu0 %v75
    %100 = vmatprep.subr.mxu0 0.0
    %101 = vmatpush1.msra.mxu0 %v76
    %102 = vmatprep.subr.mxu0 0.0
    %103 = vmatpush1.msra.mxu0 %v77
    %104 = vmatprep.subr.mxu0 0.0
    %105 = vmatpush1.msra.mxu0 %v78
    %106 = vmatprep.subr.mxu0 0.0
    %107 = vmatpush1.msra.mxu0 %v79
    %108 = vmatprep.subr.mxu0 0.0
    %109 = vmatpush1.msra.mxu0 %v80
    %110 = vmatprep.subr.mxu0 0.0
    %111 = vmatpush1.msra.mxu0 %v81
    %112 = vmatprep.subr.mxu0 0.0
    %113 = vmatpush1.msra.mxu0 %v82
    %114 = vmatprep.subr.mxu0 0.0
    %115 = vmatpush1.msra.mxu0 %v83
    %116 = vmatprep.subr.mxu0 0.0
    %117 = vmatpush1.msra.mxu0 %v84
    %118 = vmatprep.subr.mxu0 0.0
    %119 = vmatpush1.msra.mxu0 %v85
    %120 = vmatprep.subr.mxu0 0.0
    %121 = vmatpush1.msra.mxu0 %v86
    %122 = vmatprep.subr.mxu0 0.0
    %123 = vmatpush1.msra.mxu0 %v87
    %124 = vmatprep.subr.mxu0 0.0
    %125 = vmatpush1.msra.mxu0 %v88
    %126 = vmatprep.subr.mxu0 0.0
    %127 = vmatpush1.msra.mxu0 0.0
    %128 = vmatprep.subr.mxu0 0.0
    %129 = vmatpush1.msra.mxu0 0.0
    %130 = vmatprep.subr.mxu0 0.0
    %131 = vmatpush1.msra.mxu0 0.0
    %132 = vmatprep.subr.mxu0 0.0
    %133 = vmatpush1.msra.mxu0 0.0
    %134 = vmatprep.subr.mxu0 0.0
    %135 = vmatpush1.msra.mxu0 0.0
    %136 = vmatprep.subr.mxu0 0.0
    %137 = vmatpush1.msra.mxu0 0.0
    %138 = vmatprep.subr.mxu0 0.0
    %139 = vmatpush1.msra.mxu0 0.0
    %140 = vmatprep.subr.mxu0 0.0
    %141 = vmatpush1.msra.mxu0 0.0
    %142 = vmatprep.subr.mxu0 0.0
    %143 = vmatpush1.msra.mxu0 0.0
    %144 = vmatprep.subr.mxu0 0.0
    %145 = vmatpush1.msra.mxu0 0.0
    %146 = vmatprep.subr.mxu0 0.0
    %147 = vmatpush1.msra.mxu0 0.0
    %148 = vmatprep.subr.mxu0 0.0
    %149 = vmatpush1.msra.mxu0 0.0
    %150 = vmatprep.subr.mxu0 0.0
    %151 = vmatpush1.msra.mxu0 0.0
    %152 = vmatprep.subr.mxu0 0.0
    %153 = vmatpush1.msra.mxu0 0.0
    %154 = vmatprep.subr.mxu0 0.0
    %155 = vmatpush1.msra.mxu0 0.0
    %156 = vmatprep.subr.mxu0 0.0
    %157 = vmatpush1.msra.mxu0 0.0
    %158 = vmatprep.mubr.f32.mxu0 0.0
    %159 = vmatmul.mubr.f32.gmra.mrb[0].mxu0 %v71
    %v160 = vpop.f32.mrb[0].mxu0
    %v161 = vadd.f32 %v93, %v160
    %v162 = vpop.f32.mrb[0].mxu0
    %163 = vmatprep.mubr.f32.mxu0 0.0
    %164 = vmatmul.mubr.f32.gmra.mrb[0].mxu0 %v72
    %v165 = vpop.f32.mrb[0].mxu0
    %v166 = vadd.f32 %v93, %v165
    %v167 = vpop.f32.mrb[0].mxu0
    %168 = vdwg.mxu0
    %v169 = vxor.u32 %v161, 2147483648
    %v170 = vxor.u32 %v166, 2147483648
    %v171 = vmul.f32 %v169, 1.442695
    %v172 = vpow.pop %v171
    %v173 = vmul.f32 %v170, 1.442695
    %v174 = vpow.pop %v173
    %v175 = vadd.f32 %v172, 1.0
    %v176 = vadd.f32 %v174, 1.0
    %v177 = vrcp.pop %v175
    %v178 = vmul.f32 1.0, %v177
    %v179 = vrcp.pop %v176
    %v180 = vmul.f32 1.0, %v179
    %v181 = vmul.f32 %v161, %v178
    %v182 = vmul.f32 %v166, %v180
    %v183 = vld [vmem:[#allocation7] sm:$0xff]
    %v184 = vld [vmem:[#allocation7 + $0x8] sm:$0xff]
    %v185 = vld [vmem:[#allocation7 + $0x10] sm:$0xff]
    %v186 = vld [vmem:[#allocation7 + $0x18] sm:$0xff]
    %v187 = vld [vmem:[#allocation7 + $0x20] sm:$0xff]
    %v188 = vld [vmem:[#allocation7 + $0x28] sm:$0xff]
    %v189 = vld [vmem:[#allocation7 + $0x30] sm:$0xff]
    %v190 = vld [vmem:[#allocation7 + $0x38] sm:$0xff]
    %v191 = vld [vmem:[#allocation7 + $0x40] sm:$0xff]
    %v192 = vld [vmem:[#allocation7 + $0x48] sm:$0xff]
    %v193 = vld [vmem:[#allocation7 + $0x50] sm:$0xff]
    %v194 = vld [vmem:[#allocation7 + $0x58] sm:$0xff]
    %v195 = vld [vmem:[#allocation7 + $0x60] sm:$0xff]
    %v196 = vld [vmem:[#allocation7 + $0x68] sm:$0xff]
    %v197 = vld [vmem:[#allocation7 + $0x70] sm:$0xff]
    %v198 = vld [vmem:[#allocation7 + $0x78] sm:$0xff]
    %v199 = vld [vmem:[#allocation8 + $0x1] sm:$0x1]
    %v200 = vlaneseq
    %v201 = vshrl.u32 %v200, 7
    %v202 = vsub.s32 0, %v201
    %v203 = vrot.slane %v199, %v202
    %204 = vmatprep.subr.mxu0 0.0
    %205 = vmatpush1.msra.mxu0 %v183
    %206 = vmatprep.subr.mxu0 0.0
    %207 = vmatpush1.msra.mxu0 %v184
    %208 = vmatprep.subr.mxu0 0.0
    %209 = vmatpush1.msra.mxu0 %v185
    %210 = vmatprep.subr.mxu0 0.0
    %211 = vmatpush1.msra.mxu0 %v186
    %212 = vmatprep.subr.mxu0 0.0
    %213 = vmatpush1.msra.mxu0 %v187
    %214 = vmatprep.subr.mxu0 0.0
    %215 = vmatpush1.msra.mxu0 %v188
    %216 = vmatprep.subr.mxu0 0.0
    %217 = vmatpush1.msra.mxu0 %v189
    %218 = vmatprep.subr.mxu0 0.0
    %219 = vmatpush1.msra.mxu0 %v190
    %220 = vmatprep.subr.mxu0 0.0
    %221 = vmatpush1.msra.mxu0 %v191
    %222 = vmatprep.subr.mxu0 0.0
    %223 = vmatpush1.msra.mxu0 %v192
    %224 = vmatprep.subr.mxu0 0.0
    %225 = vmatpush1.msra.mxu0 %v193
    %226 = vmatprep.subr.mxu0 0.0
    %227 = vmatpush1.msra.mxu0 %v194
    %228 = vmatprep.subr.mxu0 0.0
    %229 = vmatpush1.msra.mxu0 %v195
    %230 = vmatprep.subr.mxu0 0.0
    %231 = vmatpush1.msra.mxu0 %v196
    %232 = vmatprep.subr.mxu0 0.0
    %233 = vmatpush1.msra.mxu0 %v197
    %234 = vmatprep.subr.mxu0 0.0
    %235 = vmatpush1.msra.mxu0 %v198
    %236 = vmatprep.subr.mxu0 0.0
    %237 = vmatpush1.msra.mxu0 0.0
    %238 = vmatprep.subr.mxu0 0.0
    %239 = vmatpush1.msra.mxu0 0.0
    %240 = vmatprep.subr.mxu0 0.0
    %241 = vmatpush1.msra.mxu0 0.0
    %242 = vmatprep.subr.mxu0 0.0
    %243 = vmatpush1.msra.mxu0 0.0
    %244 = vmatprep.subr.mxu0 0.0
    %245 = vmatpush1.msra.mxu0 0.0
    %246 = vmatprep.subr.mxu0 0.0
    %247 = vmatpush1.msra.mxu0 0.0
    %248 = vmatprep.subr.mxu0 0.0
    %249 = vmatpush1.msra.mxu0 0.0
    %250 = vmatprep.subr.mxu0 0.0
    %251 = vmatpush1.msra.mxu0 0.0
    %252 = vmatprep.subr.mxu0 0.0
    %253 = vmatpush1.msra.mxu0 0.0
    %254 = vmatprep.subr.mxu0 0.0
    %255 = vmatpush1.msra.mxu0 0.0
    %256 = vmatprep.subr.mxu0 0.0
    %257 = vmatpush1.msra.mxu0 0.0
    %258 = vmatprep.subr.mxu0 0.0
    %259 = vmatpush1.msra.mxu0 0.0
    %260 = vmatprep.subr.mxu0 0.0
    %261 = vmatpush1.msra.mxu0 0.0
    %262 = vmatprep.subr.mxu0 0.0
    %263 = vmatpush1.msra.mxu0 0.0
    %264 = vmatprep.subr.mxu0 0.0
    %265 = vmatpush1.msra.mxu0 0.0
    %266 = vmatprep.subr.mxu0 0.0
    %267 = vmatpush1.msra.mxu0 0.0
    %268 = vmatprep.mubr.f32.mxu0 0.0
    %269 = vmatmul.mubr.f32.gmra.mrb[0].mxu0 %v181
    %v270 = vpop.f32.mrb[0].mxu0
    %v271 = vadd.f32 %v203, %v270
    %v272 = vpop.f32.mrb[0].mxu0
    %273 = vmatprep.mubr.f32.mxu0 0.0
    %274 = vmatmul.mubr.f32.gmra.mrb[0].mxu0 %v182
    %v275 = vpop.f32.mrb[0].mxu0
    %v276 = vadd.f32 %v203, %v275
    %v277 = vpop.f32.mrb[0].mxu0
    %278 = vdwg.mxu0
    %v279 = vxor.u32 %v271, 2147483648
    %v280 = vxor.u32 %v276, 2147483648
    %v281 = vmul.f32 %v279, 1.442695
    %v282 = vpow.pop %v281
    %v283 = vmul.f32 %v280, 1.442695
    %v284 = vpow.pop %v283
    %v285 = vadd.f32 %v282, 1.0
    %v286 = vadd.f32 %v284, 1.0
    %v287 = vrcp.pop %v285
    %v288 = vmul.f32 1.0, %v287
    %v289 = vrcp.pop %v286
    %v290 = vmul.f32 1.0, %v289
    %v291 = vmul.f32 %v271, %v288
    %v292 = vmul.f32 %v276, %v290
    %293 = vst [vmem:[#allocation10] sm:$0xff] %v291
    %294 = vst [vmem:[#allocation10 + $0x8] sm:$0xff] %v292
    // Predicated region
    $region34: #{_forward_impl.1} parent=1 // pred_check
      _
    $region35: #{_forward_impl.1} parent=1 // pred_check_branch
      %296 = sbr.rel (0) target = $region37
    $region36: #{_forward_impl.1} parent=1 // pred_region
      %s298 = ssub.s32 256, 256
      %299 = vsyncadd [#allocation4], %s298
      %s300 = sshll.u32 [#allocation10], 4
      %s301 = int_to_ptr.vmem [resolvable:$true] %s300
      %306 = dma.vmem_to_hbm [thread:$0]  %s301, 256, %s4, [#allocation4], 128, 128, 8
    $region37: #{_forward_impl.1} parent=1 // pred_fallthru
      _
    // Predicated region
    $region38: #{_forward_impl.1} parent=1 // pred_check
      _
    $region39: #{_forward_impl.1} parent=1 // pred_check_branch
      %308 = sbr.rel (0) target = $region41
    $region40: #{_forward_impl.1} parent=1 // pred_region
      %309 = dma.done [#allocation4], 256
    $region41: #{_forward_impl.1} parent=1 // pred_fallthru
      _
    %310 = vsyncpa [#allocation3], 1
    %311 = vsyncpa [#allocation6], 1
    %312 = vsyncpa [#allocation9], 1
    %313 = vsyncpa [#allocation4], 1

</llo_original>
